<compile_context>
chip_gen: v7x
topology: tpu7x:2x2x1
jax: 0.10.0
libtpu: 0.0.40
codegen_flags: <defaults>
</compile_context>

<pallas_src>
import math

import jax
import jax.numpy as jnp
from jax.experimental import pallas as pl
from jax.experimental.pallas import tpu as pltpu


def _snet_kernel(xT_ref, w1_ref, b1_ref, w2_ref, b2_ref, w3_ref, b3_ref,
                 w4_ref, b4_ref, o_ref):
    xT = xT_ref[...]                                   # (4, TB)   f32

    # ---- fcQ1: (128,4) @ (4,TB) on the MXU.  K=4 -> a near-free pass, kept
    # in f32 so the input precision is not truncated.
    h1 = jnp.dot(w1_ref[...], xT,
                 preferred_element_type=jnp.float32) + b1_ref[...]
    h1 = jnp.maximum(h1, 0.0)                          # (128, TB) f32

    # ---- fcQ2: (64,128) @ (128,TB), bf16 operands, f32 accumulation.
    h2 = jnp.dot(w2_ref[...], h1.astype(jnp.bfloat16),
                 preferred_element_type=jnp.float32) + b2_ref[...]
    h2 = jnp.maximum(h2, 0.0)                          # (64, TB)  f32

    # ---- fcQ3: (32,64) @ (64,TB), bf16 operands, f32 accumulation.
    h3 = jnp.dot(w3_ref[...], h2.astype(jnp.bfloat16),
                 preferred_element_type=jnp.float32) + b3_ref[...]
    h3 = jnp.maximum(h3, 0.0)                          # (32, TB)  f32

    # ---- fc_tail: (2,32) @ (32,TB) in f32; one unmasked full-tile store.
    q = jnp.dot(w4_ref[...], h3,
                preferred_element_type=jnp.float32) + b4_ref[...]
    o_ref[...] = q.astype(o_ref.dtype)                 # (2, TB)


def _round_up(n, m):
    return ((n + m - 1) // m) * m


def snetwork_forward(x, params, tile_b=4096):
    """Fused SNetwork forward pass.

    x: (B, 4) float32
    params: dict with torch-layout weights w1 (128,4), w2 (64,128),
            w3 (32,64), w4 (2,32) and biases b1..b4 of shape (out, 1).
    returns: (B, 2) float32
    """
    B = x.shape[0]

    # Batch lives in the lane dimension -> align to 128 lanes.
    b_al = _round_up(B, 128)
    tb = min(tile_b, b_al)
    # v7x megacore: if one tile would cover the whole batch, split into >= 2
    # grid steps so "parallel" can shard across both TensorCores.
    if b_al > 128 and b_al <= tile_b:
        tb = _round_up((b_al + 1) // 2, 128)
    b_pad = _round_up(b_al, tb)

    # Wrapper-side layout plumbing: feature-major, batch-in-lanes.
    xT = jnp.zeros((4, b_pad), dtype=jnp.float32).at[:, :B].set(x.T)

    # bf16 operands for the two MXU-heavy layers; everything else stays f32.
    w2 = params["w2"].astype(jnp.bfloat16)
    w3 = params["w3"].astype(jnp.bfloat16)
    args = (xT,
            params["w1"], params["b1"],
            w2, params["b2"],
            w3, params["b3"],
            params["w4"], params["b4"])

    def resident(arr):  # full-array block, constant index -> stays in VMEM
        return pl.BlockSpec(arr.shape, lambda i: (0, 0))

    in_specs = [pl.BlockSpec((4, tb), lambda i: (0, i))]
    in_specs += [resident(a) for a in args[1:]]
    out_spec = pl.BlockSpec((2, tb), lambda i: (0, i))

    flops = 2 * b_pad * (4 * 128 + 128 * 64 + 64 * 32 + 32 * 2)
    param_bytes = sum(int(a.size) * a.dtype.itemsize for a in args[1:])
    bytes_accessed = b_pad * 4 * 4 + b_pad * 2 * 4 + param_bytes

    out_t = pl.pallas_call(
        _snet_kernel,
        out_shape=jax.ShapeDtypeStruct((2, b_pad), jnp.float32),
        grid=(b_pad // tb,),
        in_specs=in_specs,
        out_specs=out_spec,
        compiler_params=pltpu.CompilerParams(
            dimension_semantics=("parallel",)),
        cost_estimate=pl.CostEstimate(
            flops=flops, transcendentals=0, bytes_accessed=bytes_accessed),
    )(*args)
    return out_t.T[:B]


def init_params(key):
    """Deterministic init mimicking torch.nn.Linear default U(-1/sqrt(fan_in), +).

    Weights are torch layout (out, in); biases are (out, 1)."""
    keys = jax.random.split(key, 8)

    def u(k, shape, fan_in):
        bound = 1.0 / math.sqrt(fan_in)
        return jax.random.uniform(k, shape, minval=-bound, maxval=bound,
                                  dtype=jnp.float32)

    return {
        "w1": u(keys[0], (128, 4), 4),    "b1": u(keys[1], (128, 1), 4),
        "w2": u(keys[2], (64, 128), 128), "b2": u(keys[3], (64, 1), 128),
        "w3": u(keys[4], (32, 64), 64),   "b3": u(keys[5], (32, 1), 64),
        "w4": u(keys[6], (2, 32), 32),    "b4": u(keys[7], (2, 1), 32),
    }


def reference_forward(x, params):
    h = jnp.maximum(x @ params["w1"].T + params["b1"].T, 0.0)
    h = jnp.maximum(h @ params["w2"].T + params["b2"].T, 0.0)
    h = jnp.maximum(h @ params["w3"].T + params["b3"].T, 0.0)
    return h @ params["w4"].T + params["b4"].T


if __name__ == "__main__":
    key = jax.random.PRNGKey(0)
    pkey, xkey = jax.random.split(key)

    params = init_params(pkey)
    x = jax.random.normal(xkey, (8, 4), dtype=jnp.float32)   # batch=8, obs_dim=4

    out = snetwork_forward(x, params)
    out = jax.block_until_ready(out)

    ref = reference_forward(x, params)
    assert out.shape == (8, 2), out.shape
    # fcQ2/fcQ3 use bf16 MXU operands with f32 accumulation -> small deviation
    # vs the pure-f32 reference.
    assert jnp.allclose(out, ref, atol=5e-2, rtol=5e-2), "mismatch vs reference"

    print("KERNEL_OK")
</pallas_src>

<mosaic_0001>
module attributes {stable_mosaic.version = 11 : i64} {
  func.func @_snet_kernel(%arg0: i32, %arg1: memref<4x128xf32, #tpu.memory_space<vmem>>, %arg2: memref<128x4xf32, #tpu.memory_space<vmem>>, %arg3: memref<128x1xf32, #tpu.memory_space<vmem>>, %arg4: memref<64x128xbf16, #tpu.memory_space<vmem>>, %arg5: memref<64x1xf32, #tpu.memory_space<vmem>>, %arg6: memref<32x64xbf16, #tpu.memory_space<vmem>>, %arg7: memref<32x1xf32, #tpu.memory_space<vmem>>, %arg8: memref<2x32xf32, #tpu.memory_space<vmem>>, %arg9: memref<2x1xf32, #tpu.memory_space<vmem>>, %arg10: memref<2x128xf32, #tpu.memory_space<vmem>>) attributes {dimension_semantics = [#tpu.dimension_semantics<parallel>], iteration_bounds = array<i64: 1>, scalar_prefetch = 0 : i64, scratch_operands = 0 : i64, tpu.core_type = #tpu.core_type<tc>, window_params = [{transform_indices = @transform_0, window_bounds = array<i64: 4, 128>}, {pipeline_mode = #tpu.pipeline_mode<synchronous>, transform_indices = @transform_1, window_bounds = array<i64: 128, 4>}, {pipeline_mode = #tpu.pipeline_mode<synchronous>, transform_indices = @transform_2, window_bounds = array<i64: 128, 1>}, {pipeline_mode = #tpu.pipeline_mode<synchronous>, transform_indices = @transform_3, window_bounds = array<i64: 64, 128>}, {pipeline_mode = #tpu.pipeline_mode<synchronous>, transform_indices = @transform_4, window_bounds = array<i64: 64, 1>}, {pipeline_mode = #tpu.pipeline_mode<synchronous>, transform_indices = @transform_5, window_bounds = array<i64: 32, 64>}, {pipeline_mode = #tpu.pipeline_mode<synchronous>, transform_indices = @transform_6, window_bounds = array<i64: 32, 1>}, {pipeline_mode = #tpu.pipeline_mode<synchronous>, transform_indices = @transform_7, window_bounds = array<i64: 2, 32>}, {pipeline_mode = #tpu.pipeline_mode<synchronous>, transform_indices = @transform_8, window_bounds = array<i64: 2, 1>}, {transform_indices = @transform_9, window_bounds = array<i64: 2, 128>}]} {
    %c0 = arith.constant 0 : index
    %c0_0 = arith.constant 0 : index
    %0 = vector.load %arg1[%c0, %c0_0] : memref<4x128xf32, #tpu.memory_space<vmem>>, vector<4x128xf32>
    %c0_1 = arith.constant 0 : index
    %c0_2 = arith.constant 0 : index
    %1 = vector.load %arg2[%c0_1, %c0_2] : memref<128x4xf32, #tpu.memory_space<vmem>>, vector<128x4xf32>
    %cst = arith.constant dense<0.000000e+00> : vector<128x128xf32>
    %2 = tpu.matmul %1, %0, %cst {dimension_numbers = #tpu.dot_dimension_numbers<[1], [0], [0], [1], [0, 0, 1, 1], [], []>} : vector<128x4xf32>, vector<4x128xf32>, vector<128x128xf32> -> vector<128x128xf32>
    %c0_3 = arith.constant 0 : index
    %c0_4 = arith.constant 0 : index
    %3 = vector.load %arg3[%c0_3, %c0_4] : memref<128x1xf32, #tpu.memory_space<vmem>>, vector<128x1xf32>
    %4 = vector.broadcast %3 : vector<128x1xf32> to vector<128x128xf32>
    %5 = arith.addf %2, %4 : vector<128x128xf32>
    %cst_5 = arith.constant 0.000000e+00 : f32
    %6 = vector.broadcast %cst_5 : f32 to vector<128x128xf32>
    %7 = arith.maximumf %5, %6 : vector<128x128xf32>
    %c0_6 = arith.constant 0 : index
    %c0_7 = arith.constant 0 : index
    %8 = vector.load %arg4[%c0_6, %c0_7] : memref<64x128xbf16, #tpu.memory_space<vmem>>, vector<64x128xbf16>
    %9 = arith.truncf %7 : vector<128x128xf32> to vector<128x128xbf16>
    %cst_8 = arith.constant dense<0.000000e+00> : vector<64x128xf32>
    %10 = tpu.matmul %8, %9, %cst_8 {dimension_numbers = #tpu.dot_dimension_numbers<[1], [0], [0], [1], [0, 0, 1, 1], [], []>} : vector<64x128xbf16>, vector<128x128xbf16>, vector<64x128xf32> -> vector<64x128xf32>
    %c0_9 = arith.constant 0 : index
    %c0_10 = arith.constant 0 : index
    %11 = vector.load %arg5[%c0_9, %c0_10] : memref<64x1xf32, #tpu.memory_space<vmem>>, vector<64x1xf32>
    %12 = vector.broadcast %11 : vector<64x1xf32> to vector<64x128xf32>
    %13 = arith.addf %10, %12 : vector<64x128xf32>
    %cst_11 = arith.constant 0.000000e+00 : f32
    %14 = vector.broadcast %cst_11 : f32 to vector<64x128xf32>
    %15 = arith.maximumf %13, %14 : vector<64x128xf32>
    %c0_12 = arith.constant 0 : index
    %c0_13 = arith.constant 0 : index
    %16 = vector.load %arg6[%c0_12, %c0_13] : memref<32x64xbf16, #tpu.memory_space<vmem>>, vector<32x64xbf16>
    %17 = arith.truncf %15 : vector<64x128xf32> to vector<64x128xbf16>
    %cst_14 = arith.constant dense<0.000000e+00> : vector<32x128xf32>
    %18 = tpu.matmul %16, %17, %cst_14 {dimension_numbers = #tpu.dot_dimension_numbers<[1], [0], [0], [1], [0, 0, 1, 1], [], []>} : vector<32x64xbf16>, vector<64x128xbf16>, vector<32x128xf32> -> vector<32x128xf32>
    %c0_15 = arith.constant 0 : index
    %c0_16 = arith.constant 0 : index
    %19 = vector.load %arg7[%c0_15, %c0_16] : memref<32x1xf32, #tpu.memory_space<vmem>>, vector<32x1xf32>
    %20 = vector.broadcast %19 : vector<32x1xf32> to vector<32x128xf32>
    %21 = arith.addf %18, %20 : vector<32x128xf32>
    %cst_17 = arith.constant 0.000000e+00 : f32
    %22 = vector.broadcast %cst_17 : f32 to vector<32x128xf32>
    %23 = arith.maximumf %21, %22 : vector<32x128xf32>
    %c0_18 = arith.constant 0 : index
    %c0_19 = arith.constant 0 : index
    %24 = vector.load %arg8[%c0_18, %c0_19] : memref<2x32xf32, #tpu.memory_space<vmem>>, vector<2x32xf32>
    %cst_20 = arith.constant dense<0.000000e+00> : vector<2x128xf32>
    %25 = tpu.matmul %24, %23, %cst_20 {dimension_numbers = #tpu.dot_dimension_numbers<[1], [0], [0], [1], [0, 0, 1, 1], [], []>} : vector<2x32xf32>, vector<32x128xf32>, vector<2x128xf32> -> vector<2x128xf32>
    %c0_21 = arith.constant 0 : index
    %c0_22 = arith.constant 0 : index
    %26 = vector.load %arg9[%c0_21, %c0_22] : memref<2x1xf32, #tpu.memory_space<vmem>>, vector<2x1xf32>
    %27 = vector.broadcast %26 : vector<2x1xf32> to vector<2x128xf32>
    %28 = arith.addf %25, %27 : vector<2x128xf32>
    %c0_23 = arith.constant 0 : index
    %c0_24 = arith.constant 0 : index
    %29 = vector.load %arg10[%c0_23, %c0_24] : memref<2x128xf32, #tpu.memory_space<vmem>>, vector<2x128xf32>
    tpu.vector_store %arg10[%c0_23, %c0_24], %28 {strides = array<i32>} : memref<2x128xf32, #tpu.memory_space<vmem>>, vector<2x128xf32>,
    return
  }
  func.func @transform_0(%arg0: i32) -> (i32, i32) {
    %c0_i32 = arith.constant 0 : i32
    %c0_i32_0 = arith.constant 0 : i32
    return %c0_i32, %arg0 : i32, i32
  }
  func.func @transform_1(%arg0: i32) -> (i32, i32) {
    %c0_i32 = arith.constant 0 : i32
    %c0_i32_0 = arith.constant 0 : i32
    %c0_i32_1 = arith.constant 0 : i32
    return %c0_i32, %c0_i32_0 : i32, i32
  }
  func.func @transform_2(%arg0: i32) -> (i32, i32) {
    %c0_i32 = arith.constant 0 : i32
    %c0_i32_0 = arith.constant 0 : i32
    %c0_i32_1 = arith.constant 0 : i32
    return %c0_i32, %c0_i32_0 : i32, i32
  }
  func.func @transform_3(%arg0: i32) -> (i32, i32) {
    %c0_i32 = arith.constant 0 : i32
    %c0_i32_0 = arith.constant 0 : i32
    %c0_i32_1 = arith.constant 0 : i32
    return %c0_i32, %c0_i32_0 : i32, i32
  }
  func.func @transform_4(%arg0: i32) -> (i32, i32) {
    %c0_i32 = arith.constant 0 : i32
    %c0_i32_0 = arith.constant 0 : i32
    %c0_i32_1 = arith.constant 0 : i32
    return %c0_i32, %c0_i32_0 : i32, i32
  }
  func.func @transform_5(%arg0: i32) -> (i32, i32) {
    %c0_i32 = arith.constant 0 : i32
    %c0_i32_0 = arith.constant 0 : i32
    %c0_i32_1 = arith.constant 0 : i32
    return %c0_i32, %c0_i32_0 : i32, i32
  }
  func.func @transform_6(%arg0: i32) -> (i32, i32) {
    %c0_i32 = arith.constant 0 : i32
    %c0_i32_0 = arith.constant 0 : i32
    %c0_i32_1 = arith.constant 0 : i32
    return %c0_i32, %c0_i32_0 : i32, i32
  }
  func.func @transform_7(%arg0: i32) -> (i32, i32) {
    %c0_i32 = arith.constant 0 : i32
    %c0_i32_0 = arith.constant 0 : i32
    %c0_i32_1 = arith.constant 0 : i32
    return %c0_i32, %c0_i32_0 : i32, i32
  }
  func.func @transform_8(%arg0: i32) -> (i32, i32) {
    %c0_i32 = arith.constant 0 : i32
    %c0_i32_0 = arith.constant 0 : i32
    %c0_i32_1 = arith.constant 0 : i32
    return %c0_i32, %c0_i32_0 : i32, i32
  }
  func.func @transform_9(%arg0: i32) -> (i32, i32) {
    %c0_i32 = arith.constant 0 : i32
    %c0_i32_0 = arith.constant 0 : i32
    return %c0_i32, %arg0 : i32, i32
  }
}

</mosaic_0001>

<llo_original>
// kernel: tpu_custom_call.1
$region0: #{tpu_custom_call.1}
  #allocation0 [shape = 'u32[]', space=smem, size = 0x4, offset = 0x4, fixed_abs, tag = 'smem constant byte address 0x4 - core index']
  #allocation1 [shape = 'u32[144,128]{1,0:T(1,128)}', space=vmem, size = 0x12000, scoped, tag = 'internal scratch']
  %s0 = inlined_call_operand.vmem [shape: f32[4,128], index: 0, kind: input, shape index: {}]
  %s1 = inlined_call_operand.vmem [shape: f32[128,4], index: 1, kind: input, shape index: {}]
  %s2 = inlined_call_operand.vmem [shape: f32[128,1], index: 2, kind: input, shape index: {}]
  %s3 = inlined_call_operand.vmem [shape: bf16[64,128], index: 3, kind: input, shape index: {}]
  %s4 = inlined_call_operand.vmem [shape: f32[64,1], index: 4, kind: input, shape index: {}]
  %s5 = inlined_call_operand.vmem [shape: bf16[32,64], index: 5, kind: input, shape index: {}]
  %s6 = inlined_call_operand.vmem [shape: f32[32,1], index: 6, kind: input, shape index: {}]
  %s7 = inlined_call_operand.vmem [shape: f32[2,32], index: 7, kind: input, shape index: {}]
  %s8 = inlined_call_operand.vmem [shape: f32[2,1], index: 8, kind: input, shape index: {}]
  %s9 = inlined_call_operand.hbm [shape: f32[2,128], index: 9, kind: output, shape index: {}]
  %s10 = sld [smem:[#allocation0]]
  $region46: #{tpu_custom_call.1} parent=0
    _
  %s12 = ssub.s32 1, %s10
  %s13 = scalar_select 0, %s12, %s10
  $region1: #{tpu_custom_call.1} parent=0
    #allocation2 [shape = 'u8[1024]{0}', space=vmem, size = 0x400, scoped, tag = 'output window, operand 0, single buffered']
    #allocation3 [shape = 's32[1]{0}', space=sflag, size = 0x4, scoped, tag = 'scoped memory for tpu_custom_call.1']
    %14 = vsyncpa [#allocation3], 0
    // Predicated region
    $region2: #{tpu_custom_call.1} parent=1 // pred_check
      _
    $region3: #{tpu_custom_call.1} parent=1 // pred_check_branch
      %16 = sbr.rel (0) target = $region5
    $region4: #{tpu_custom_call.1} parent=1 // pred_region
      _
    $region5: #{tpu_custom_call.1} parent=1 // pred_fallthru
      _
    // Predicated region
    $region6: #{tpu_custom_call.1} parent=1 // pred_check
      _
    $region7: #{tpu_custom_call.1} parent=1 // pred_check_branch
      %18 = sbr.rel (0) target = $region9
    $region8: #{tpu_custom_call.1} parent=1 // pred_region
      _
    $region9: #{tpu_custom_call.1} parent=1 // pred_fallthru
      _
    // Predicated region
    $region10: #{tpu_custom_call.1} parent=1 // pred_check
      _
    $region11: #{tpu_custom_call.1} parent=1 // pred_check_branch
      %20 = sbr.rel (0) target = $region13
    $region12: #{tpu_custom_call.1} parent=1 // pred_region
      _
    $region13: #{tpu_custom_call.1} parent=1 // pred_fallthru
      _
    // Predicated region
    $region14: #{tpu_custom_call.1} parent=1 // pred_check
      _
    $region15: #{tpu_custom_call.1} parent=1 // pred_check_branch
      %22 = sbr.rel (0) target = $region17
    $region16: #{tpu_custom_call.1} parent=1 // pred_region
      _
    $region17: #{tpu_custom_call.1} parent=1 // pred_fallthru
      _
    // Predicated region
    $region18: #{tpu_custom_call.1} parent=1 // pred_check
      _
    $region19: #{tpu_custom_call.1} parent=1 // pred_check_branch
      %24 = sbr.rel (0) target = $region21
    $region20: #{tpu_custom_call.1} parent=1 // pred_region
      _
    $region21: #{tpu_custom_call.1} parent=1 // pred_fallthru
      _
    // Predicated region
    $region22: #{tpu_custom_call.1} parent=1 // pred_check
      _
    $region23: #{tpu_custom_call.1} parent=1 // pred_check_branch
      %26 = sbr.rel (0) target = $region25
    $region24: #{tpu_custom_call.1} parent=1 // pred_region
      _
    $region25: #{tpu_custom_call.1} parent=1 // pred_fallthru
      _
    // Predicated region
    $region26: #{tpu_custom_call.1} parent=1 // pred_check
      _
    $region27: #{tpu_custom_call.1} parent=1 // pred_check_branch
      %28 = sbr.rel (0) target = $region29
    $region28: #{tpu_custom_call.1} parent=1 // pred_region
      _
    $region29: #{tpu_custom_call.1} parent=1 // pred_fallthru
      _
    // Predicated region
    $region30: #{tpu_custom_call.1} parent=1 // pred_check
      _
    $region31: #{tpu_custom_call.1} parent=1 // pred_check_branch
      %30 = sbr.rel (0) target = $region33
    $region32: #{tpu_custom_call.1} parent=1 // pred_region
      _
    $region33: #{tpu_custom_call.1} parent=1 // pred_fallthru
      _
    // Predicated region
    $region34: #{tpu_custom_call.1} parent=1 // pred_check
      _
    $region35: #{tpu_custom_call.1} parent=1 // pred_check_branch
      %32 = sbr.rel (0) target = $region37
    $region36: #{tpu_custom_call.1} parent=1 // pred_region
      _
    $region37: #{tpu_custom_call.1} parent=1 // pred_fallthru
      _
    %v34 = vld [vmem:[%s0] sm:$0xf]
    %v35 = vld [vmem:[%s1] sm:$0xff]
    %v36 = vld [vmem:[%s1 + $0x8] sm:$0xff]
    %v37 = vld [vmem:[%s1 + $0x10] sm:$0xff]
    %v38 = vld [vmem:[%s1 + $0x18] sm:$0xff]
    %v39 = vld [vmem:[%s1 + $0x20] sm:$0xff]
    %v40 = vld [vmem:[%s1 + $0x28] sm:$0xff]
    %v41 = vld [vmem:[%s1 + $0x30] sm:$0xff]
    %v42 = vld [vmem:[%s1 + $0x38] sm:$0xff]
    %v43 = vld [vmem:[%s1 + $0x40] sm:$0xff]
    %v44 = vld [vmem:[%s1 + $0x48] sm:$0xff]
    %v45 = vld [vmem:[%s1 + $0x50] sm:$0xff]
    %v46 = vld [vmem:[%s1 + $0x58] sm:$0xff]
    %v47 = vld [vmem:[%s1 + $0x60] sm:$0xff]
    %v48 = vld [vmem:[%s1 + $0x68] sm:$0xff]
    %v49 = vld [vmem:[%s1 + $0x70] sm:$0xff]
    %v50 = vld [vmem:[%s1 + $0x78] sm:$0xff]
    %v51 = vld [vmem:[%s2] sm:$0xff]
    %v52 = vld [vmem:[%s2 + $0x8] sm:$0xff]
    %v53 = vld [vmem:[%s2 + $0x10] sm:$0xff]
    %v54 = vld [vmem:[%s2 + $0x18] sm:$0xff]
    %v55 = vld [vmem:[%s2 + $0x20] sm:$0xff]
    %v56 = vld [vmem:[%s2 + $0x28] sm:$0xff]
    %v57 = vld [vmem:[%s2 + $0x30] sm:$0xff]
    %v58 = vld [vmem:[%s2 + $0x38] sm:$0xff]
    %v59 = vld [vmem:[%s2 + $0x40] sm:$0xff]
    %v60 = vld [vmem:[%s2 + $0x48] sm:$0xff]
    %v61 = vld [vmem:[%s2 + $0x50] sm:$0xff]
    %v62 = vld [vmem:[%s2 + $0x58] sm:$0xff]
    %v63 = vld [vmem:[%s2 + $0x60] sm:$0xff]
    %v64 = vld [vmem:[%s2 + $0x68] sm:$0xff]
    %v65 = vld [vmem:[%s2 + $0x70] sm:$0xff]
    %v66 = vld [vmem:[%s2 + $0x78] sm:$0xff]
    %68 = vset.pattern.permute.xlu0 0
    %69 = vperm.xlu0 %68, %v51
    %v70 = vpop.permute.xlu0 %69
    %73 = vset.pattern.permute.xlu0 0
    %74 = vperm.xlu0 %73, %v52
    %v75 = vpop.permute.xlu0 %74
    %78 = vset.pattern.permute.xlu0 0
    %79 = vperm.xlu0 %78, %v53
    %v80 = vpop.permute.xlu0 %79
    %83 = vset.pattern.permute.xlu0 0
    %84 = vperm.xlu0 %83, %v54
    %v85 = vpop.permute.xlu0 %84
    %88 = vset.pattern.permute.xlu0 0
    %89 = vperm.xlu0 %88, %v55
    %v90 = vpop.permute.xlu0 %89
    %93 = vset.pattern.permute.xlu0 0
    %94 = vperm.xlu0 %93, %v56
    %v95 = vpop.permute.xlu0 %94
    %98 = vset.pattern.permute.xlu0 0
    %99 = vperm.xlu0 %98, %v57
    %v100 = vpop.permute.xlu0 %99
    %103 = vset.pattern.permute.xlu0 0
    %104 = vperm.xlu0 %103, %v58
    %v105 = vpop.permute.xlu0 %104
    %108 = vset.pattern.permute.xlu0 0
    %109 = vperm.xlu0 %108, %v59
    %v110 = vpop.permute.xlu0 %109
    %113 = vset.pattern.permute.xlu0 0
    %114 = vperm.xlu0 %113, %v60
    %v115 = vpop.permute.xlu0 %114
    %118 = vset.pattern.permute.xlu0 0
    %119 = vperm.xlu0 %118, %v61
    %v120 = vpop.permute.xlu0 %119
    %123 = vset.pattern.permute.xlu0 0
    %124 = vperm.xlu0 %123, %v62
    %v125 = vpop.permute.xlu0 %124
    %128 = vset.pattern.permute.xlu0 0
    %129 = vperm.xlu0 %128, %v63
    %v130 = vpop.permute.xlu0 %129
    %133 = vset.pattern.permute.xlu0 0
    %134 = vperm.xlu0 %133, %v64
    %v135 = vpop.permute.xlu0 %134
    %138 = vset.pattern.permute.xlu0 0
    %139 = vperm.xlu0 %138, %v65
    %v140 = vpop.permute.xlu0 %139
    %143 = vset.pattern.permute.xlu0 0
    %144 = vperm.xlu0 %143, %v66
    %v145 = vpop.permute.xlu0 %144
    %vm147 = vcmask 31744
    %v149 = vsel %vm147, %v35, 0
    %v152 = vsel %vm147, %v36, 0
    %v155 = vsel %vm147, %v37, 0
    %v158 = vsel %vm147, %v38, 0
    %v161 = vsel %vm147, %v39, 0
    %v164 = vsel %vm147, %v40, 0
    %v167 = vsel %vm147, %v41, 0
    %v170 = vsel %vm147, %v42, 0
    %v173 = vsel %vm147, %v43, 0
    %v176 = vsel %vm147, %v44, 0
    %v179 = vsel %vm147, %v45, 0
    %v182 = vsel %vm147, %v46, 0
    %v185 = vsel %vm147, %v47, 0
    %v188 = vsel %vm147, %v48, 0
    %v191 = vsel %vm147, %v49, 0
    %v194 = vsel %vm147, %v50, 0
    %vm196 = vcmask 1043456
    %v198 = vsel %vm196, %v34, 0
    %200 = vmatprep.subr.mxu0 0.0
    %201 = vmatpush1.msra.mxu0 %v198
    %202 = vmatprep.subr.mxu0 0.0
    %203 = vmatpush1.msra.mxu0 0.0
    %204 = vmatprep.subr.mxu0 0.0
    %205 = vmatpush1.msra.mxu0 0.0
    %206 = vmatprep.subr.mxu0 0.0
    %207 = vmatpush1.msra.mxu0 0.0
    %208 = vmatprep.subr.mxu0 0.0
    %209 = vmatpush1.msra.mxu0 0.0
    %210 = vmatprep.subr.mxu0 0.0
    %211 = vmatpush1.msra.mxu0 0.0
    %212 = vmatprep.subr.mxu0 0.0
    %213 = vmatpush1.msra.mxu0 0.0
    %214 = vmatprep.subr.mxu0 0.0
    %215 = vmatpush1.msra.mxu0 0.0
    %216 = vmatprep.subr.mxu0 0.0
    %217 = vmatpush1.msra.mxu0 0.0
    %218 = vmatprep.subr.mxu0 0.0
    %219 = vmatpush1.msra.mxu0 0.0
    %220 = vmatprep.subr.mxu0 0.0
    %221 = vmatpush1.msra.mxu0 0.0
    %222 = vmatprep.subr.mxu0 0.0
    %223 = vmatpush1.msra.mxu0 0.0
    %224 = vmatprep.subr.mxu0 0.0
    %225 = vmatpush1.msra.mxu0 0.0
    %226 = vmatprep.subr.mxu0 0.0
    %227 = vmatpush1.msra.mxu0 0.0
    %228 = vmatprep.subr.mxu0 0.0
    %229 = vmatpush1.msra.mxu0 0.0
    %230 = vmatprep.subr.mxu0 0.0
    %231 = vmatpush1.msra.mxu0 0.0
    %232 = vmatprep.subr.mxu0 0.0
    %233 = vmatpush1.msra.mxu0 0.0
    %234 = vmatprep.subr.mxu0 0.0
    %235 = vmatpush1.msra.mxu0 0.0
    %236 = vmatprep.subr.mxu0 0.0
    %237 = vmatpush1.msra.mxu0 0.0
    %238 = vmatprep.subr.mxu0 0.0
    %239 = vmatpush1.msra.mxu0 0.0
    %240 = vmatprep.subr.mxu0 0.0
    %241 = vmatpush1.msra.mxu0 0.0
    %242 = vmatprep.subr.mxu0 0.0
    %243 = vmatpush1.msra.mxu0 0.0
    %244 = vmatprep.subr.mxu0 0.0
    %245 = vmatpush1.msra.mxu0 0.0
    %246 = vmatprep.subr.mxu0 0.0
    %247 = vmatpush1.msra.mxu0 0.0
    %248 = vmatprep.subr.mxu0 0.0
    %249 = vmatpush1.msra.mxu0 0.0
    %250 = vmatprep.subr.mxu0 0.0
    %251 = vmatpush1.msra.mxu0 0.0
    %252 = vmatprep.subr.mxu0 0.0
    %253 = vmatpush1.msra.mxu0 0.0
    %254 = vmatprep.subr.mxu0 0.0
    %255 = vmatpush1.msra.mxu0 0.0
    %256 = vmatprep.subr.mxu0 0.0
    %257 = vmatpush1.msra.mxu0 0.0
    %258 = vmatprep.subr.mxu0 0.0
    %259 = vmatpush1.msra.mxu0 0.0
    %260 = vmatprep.subr.mxu0 0.0
    %261 = vmatpush1.msra.mxu0 0.0
    %262 = vmatprep.subr.mxu0 0.0
    %263 = vmatpush1.msra.mxu0 0.0
    %264 = vmatprep.mubr.f32.mxu0 0.0
    %265 = vmatmul.mubr.f32.gmra.mrb[0].mxu0 %v149
    %v266 = vpop.f32.mrb[0].mxu0
    %v267 = vadd.f32 %v70, %v266
    %v268 = vpop.f32.mrb[0].mxu0
    %269 = vmatprep.mubr.f32.mxu0 0.0
    %270 = vmatmul.mubr.f32.gmra.mrb[0].mxu0 %v152
    %v271 = vpop.f32.mrb[0].mxu0
    %v272 = vadd.f32 %v75, %v271
    %v273 = vpop.f32.mrb[0].mxu0
    %274 = vmatprep.mubr.f32.mxu0 0.0
    %275 = vmatmul.mubr.f32.gmra.mrb[0].mxu0 %v155
    %v276 = vpop.f32.mrb[0].mxu0
    %v277 = vadd.f32 %v80, %v276
    %v278 = vpop.f32.mrb[0].mxu0
    %279 = vmatprep.mubr.f32.mxu0 0.0
    %280 = vmatmul.mubr.f32.gmra.mrb[0].mxu0 %v158
    %v281 = vpop.f32.mrb[0].mxu0
    %v282 = vadd.f32 %v85, %v281
    %v283 = vpop.f32.mrb[0].mxu0
    %284 = vmatprep.mubr.f32.mxu0 0.0
    %285 = vmatmul.mubr.f32.gmra.mrb[0].mxu0 %v161
    %v286 = vpop.f32.mrb[0].mxu0
    %v287 = vadd.f32 %v90, %v286
    %v288 = vpop.f32.mrb[0].mxu0
    %289 = vmatprep.mubr.f32.mxu0 0.0
    %290 = vmatmul.mubr.f32.gmra.mrb[0].mxu0 %v164
    %v291 = vpop.f32.mrb[0].mxu0
    %v292 = vadd.f32 %v95, %v291
    %v293 = vpop.f32.mrb[0].mxu0
    %294 = vmatprep.mubr.f32.mxu0 0.0
    %295 = vmatmul.mubr.f32.gmra.mrb[0].mxu0 %v167
    %v296 = vpop.f32.mrb[0].mxu0
    %v297 = vadd.f32 %v100, %v296
    %v298 = vpop.f32.mrb[0].mxu0
    %299 = vmatprep.mubr.f32.mxu0 0.0
    %300 = vmatmul.mubr.f32.gmra.mrb[0].mxu0 %v170
    %v301 = vpop.f32.mrb[0].mxu0
    %v302 = vadd.f32 %v105, %v301
    %v303 = vpop.f32.mrb[0].mxu0
    %304 = vmatprep.mubr.f32.mxu0 0.0
    %305 = vmatmul.mubr.f32.gmra.mrb[0].mxu0 %v173
    %v306 = vpop.f32.mrb[0].mxu0
    %v307 = vadd.f32 %v110, %v306
    %v308 = vpop.f32.mrb[0].mxu0
    %309 = vmatprep.mubr.f32.mxu0 0.0
    %310 = vmatmul.mubr.f32.gmra.mrb[0].mxu0 %v176
    %v311 = vpop.f32.mrb[0].mxu0
    %v312 = vadd.f32 %v115, %v311
    %v313 = vpop.f32.mrb[0].mxu0
    %314 = vmatprep.mubr.f32.mxu0 0.0
    %315 = vmatmul.mubr.f32.gmra.mrb[0].mxu0 %v179
    %v316 = vpop.f32.mrb[0].mxu0
    %v317 = vadd.f32 %v120, %v316
    %v318 = vpop.f32.mrb[0].mxu0
    %319 = vmatprep.mubr.f32.mxu0 0.0
    %320 = vmatmul.mubr.f32.gmra.mrb[0].mxu0 %v182
    %v321 = vpop.f32.mrb[0].mxu0
    %v322 = vadd.f32 %v125, %v321
    %v323 = vpop.f32.mrb[0].mxu0
    %324 = vmatprep.mubr.f32.mxu0 0.0
    %325 = vmatmul.mubr.f32.gmra.mrb[0].mxu0 %v185
    %v326 = vpop.f32.mrb[0].mxu0
    %v327 = vadd.f32 %v130, %v326
    %v328 = vpop.f32.mrb[0].mxu0
    %329 = vmatprep.mubr.f32.mxu0 0.0
    %330 = vmatmul.mubr.f32.gmra.mrb[0].mxu0 %v188
    %v331 = vpop.f32.mrb[0].mxu0
    %v332 = vadd.f32 %v135, %v331
    %v333 = vpop.f32.mrb[0].mxu0
    %334 = vmatprep.mubr.f32.mxu0 0.0
    %335 = vmatmul.mubr.f32.gmra.mrb[0].mxu0 %v191
    %v336 = vpop.f32.mrb[0].mxu0
    %v337 = vadd.f32 %v140, %v336
    %v338 = vpop.f32.mrb[0].mxu0
    %339 = vmatprep.mubr.f32.mxu0 0.0
    %340 = vmatmul.mubr.f32.gmra.mrb[0].mxu0 %v194
    %v341 = vpop.f32.mrb[0].mxu0
    %v342 = vadd.f32 %v145, %v341
    %v343 = vpop.f32.mrb[0].mxu0
    %344 = vdwg.mxu0
    %v345 = vmax.f32 %v267, 0.0
    %v346 = vmax.f32 %v272, 0.0
    %v347 = vmax.f32 %v277, 0.0
    %v348 = vmax.f32 %v282, 0.0
    %v349 = vmax.f32 %v287, 0.0
    %v350 = vmax.f32 %v292, 0.0
    %v351 = vmax.f32 %v297, 0.0
    %v352 = vmax.f32 %v302, 0.0
    %v353 = vmax.f32 %v307, 0.0
    %v354 = vmax.f32 %v312, 0.0
    %v355 = vmax.f32 %v317, 0.0
    %v356 = vmax.f32 %v322, 0.0
    %v357 = vmax.f32 %v327, 0.0
    %v358 = vmax.f32 %v332, 0.0
    %v359 = vmax.f32 %v337, 0.0
    %v360 = vmax.f32 %v342, 0.0
    %v361 = vld [vmem:[%s3] sm:$0xf]
    %v362 = vld [vmem:[%s3 + $0x4] sm:$0xf]
    %v363 = vld [vmem:[%s3 + $0x8] sm:$0xf]
    %v364 = vld [vmem:[%s3 + $0xc] sm:$0xf]
    %v365 = vld [vmem:[%s3 + $0x10] sm:$0xf]
    %v366 = vld [vmem:[%s3 + $0x14] sm:$0xf]
    %v367 = vld [vmem:[%s3 + $0x18] sm:$0xf]
    %v368 = vld [vmem:[%s3 + $0x1c] sm:$0xf]
    %v369 = vpack.c.bf16 %v346, %v345
    %v370 = vpack.c.bf16 %v348, %v347
    %v371 = vpack.c.bf16 %v350, %v349
    %v372 = vpack.c.bf16 %v352, %v351
    %v373 = vpack.c.bf16 %v354, %v353
    %v374 = vpack.c.bf16 %v356, %v355
    %v375 = vpack.c.bf16 %v358, %v357
    %v376 = vpack.c.bf16 %v360, %v359
    %v377 = vld [vmem:[%s4] sm:$0xff]
    %v378 = vld [vmem:[%s4 + $0x8] sm:$0xff]
    %v379 = vld [vmem:[%s4 + $0x10] sm:$0xff]
    %v380 = vld [vmem:[%s4 + $0x18] sm:$0xff]
    %v381 = vld [vmem:[%s4 + $0x20] sm:$0xff]
    %v382 = vld [vmem:[%s4 + $0x28] sm:$0xff]
    %v383 = vld [vmem:[%s4 + $0x30] sm:$0xff]
    %v384 = vld [vmem:[%s4 + $0x38] sm:$0xff]
    %386 = vset.pattern.permute.xlu0 0
    %387 = vperm.xlu0 %386, %v377
    %v388 = vpop.permute.xlu0 %387
    %391 = vset.pattern.permute.xlu0 0
    %392 = vperm.xlu0 %391, %v378
    %v393 = vpop.permute.xlu0 %392
    %396 = vset.pattern.permute.xlu0 0
    %397 = vperm.xlu0 %396, %v379
    %v398 = vpop.permute.xlu0 %397
    %401 = vset.pattern.permute.xlu0 0
    %402 = vperm.xlu0 %401, %v380
    %v403 = vpop.permute.xlu0 %402
    %406 = vset.pattern.permute.xlu0 0
    %407 = vperm.xlu0 %406, %v381
    %v408 = vpop.permute.xlu0 %407
    %411 = vset.pattern.permute.xlu0 0
    %412 = vperm.xlu0 %411, %v382
    %v413 = vpop.permute.xlu0 %412
    %416 = vset.pattern.permute.xlu0 0
    %417 = vperm.xlu0 %416, %v383
    %v418 = vpop.permute.xlu0 %417
    %421 = vset.pattern.permute.xlu0 0
    %422 = vperm.xlu0 %421, %v384
    %v423 = vpop.permute.xlu0 %422
    %v433 = vunpack.c.l.b16 %v361
    %v434 = vunpack.c.l.b16 %v362
    %v435 = vunpack.c.l.b16 %v363
    %v436 = vunpack.c.l.b16 %v364
    %v437 = vunpack.c.l.b16 %v365
    %v438 = vunpack.c.l.b16 %v366
    %v439 = vunpack.c.l.b16 %v367
    %v440 = vunpack.c.l.b16 %v368
    %v441 = vpack.c.b16 %v434, %v433
    %v442 = vpack.c.b16 %v436, %v435
    %v443 = vpack.c.b16 %v438, %v437
    %v444 = vpack.c.b16 %v440, %v439
    %449 = vmatprep.subr.bf16.mxu0 0
    %450 = vmatpush1.bf16.msra.mxu0 %v369
    %451 = vmatprep.subr.bf16.mxu0 0
    %452 = vmatpush1.bf16.msra.mxu0 %v370
    %453 = vmatprep.subr.bf16.mxu0 0
    %454 = vmatpush1.bf16.msra.mxu0 %v371
    %455 = vmatprep.subr.bf16.mxu0 0
    %456 = vmatpush1.bf16.msra.mxu0 %v372
    %457 = vmatprep.subr.bf16.mxu0 0
    %458 = vmatpush1.bf16.msra.mxu0 %v373
    %459 = vmatprep.subr.bf16.mxu0 0
    %460 = vmatpush1.bf16.msra.mxu0 %v374
    %461 = vmatprep.subr.bf16.mxu0 0
    %462 = vmatpush1.bf16.msra.mxu0 %v375
    %463 = vmatprep.subr.bf16.mxu0 0
    %464 = vmatpush1.bf16.msra.mxu0 %v376
    %465 = vmatprep.subr.bf16.mxu0 0
    %466 = vmatpush1.bf16.msra.mxu0 0
    %467 = vmatprep.subr.bf16.mxu0 0
    %468 = vmatpush1.bf16.msra.mxu0 0
    %469 = vmatprep.subr.bf16.mxu0 0
    %470 = vmatpush1.bf16.msra.mxu0 0
    %471 = vmatprep.subr.bf16.mxu0 0
    %472 = vmatpush1.bf16.msra.mxu0 0
    %473 = vmatprep.subr.bf16.mxu0 0
    %474 = vmatpush1.bf16.msra.mxu0 0
    %475 = vmatprep.subr.bf16.mxu0 0
    %476 = vmatpush1.bf16.msra.mxu0 0
    %477 = vmatprep.subr.bf16.mxu0 0
    %478 = vmatpush1.bf16.msra.mxu0 0
    %479 = vmatprep.subr.bf16.mxu0 0
    %480 = vmatpush1.bf16.msra.mxu0 0
    %481 = vmatprep.mubr.bf16.mxu0 0
    %482 = vmatmul.mubr.bf16.gmra.mrb[0].mxu0 %v441
    %v483 = vpop.f32.mrb[0].mxu0
    %v484 = vadd.f32 %v388, %v483
    %v485 = vpop.f32.mrb[0].mxu0
    %v486 = vpop.f32.mrb[0].mxu0
    %v487 = vadd.f32 %v393, %v486
    %v488 = vpop.f32.mrb[0].mxu0
    %489 = vmatprep.mubr.bf16.mxu0 0
    %490 = vmatmul.mubr.bf16.gmra.mrb[0].mxu0 %v442
    %v491 = vpop.f32.mrb[0].mxu0
    %v492 = vadd.f32 %v398, %v491
    %v493 = vpop.f32.mrb[0].mxu0
    %v494 = vpop.f32.mrb[0].mxu0
    %v495 = vadd.f32 %v403, %v494
    %v496 = vpop.f32.mrb[0].mxu0
    %497 = vmatprep.mubr.bf16.mxu0 0
    %498 = vmatmul.mubr.bf16.gmra.mrb[0].mxu0 %v443
    %v499 = vpop.f32.mrb[0].mxu0
    %v500 = vadd.f32 %v408, %v499
    %v501 = vpop.f32.mrb[0].mxu0
    %v502 = vpop.f32.mrb[0].mxu0
    %v503 = vadd.f32 %v413, %v502
    %v504 = vpop.f32.mrb[0].mxu0
    %505 = vmatprep.mubr.bf16.mxu0 0
    %506 = vmatmul.mubr.bf16.gmra.mrb[0].mxu0 %v444
    %v507 = vpop.f32.mrb[0].mxu0
    %v508 = vadd.f32 %v418, %v507
    %v509 = vpop.f32.mrb[0].mxu0
    %v510 = vpop.f32.mrb[0].mxu0
    %v511 = vadd.f32 %v423, %v510
    %v512 = vpop.f32.mrb[0].mxu0
    %513 = vdwg.mxu0
    %v514 = vmax.f32 %v484, 0.0
    %v515 = vmax.f32 %v487, 0.0
    %v516 = vmax.f32 %v492, 0.0
    %v517 = vmax.f32 %v495, 0.0
    %v518 = vmax.f32 %v500, 0.0
    %v519 = vmax.f32 %v503, 0.0
    %v520 = vmax.f32 %v508, 0.0
    %v521 = vmax.f32 %v511, 0.0
    %v522 = vld [vmem:[%s5] sm:$0xf]
    %v523 = vld [vmem:[%s5 + $0x4] sm:$0xf]
    %v524 = vld [vmem:[%s5 + $0x8] sm:$0xf]
    %v525 = vld [vmem:[%s5 + $0xc] sm:$0xf]
    %v526 = vpack.c.bf16 %v515, %v514
    %v527 = vpack.c.bf16 %v517, %v516
    %v528 = vpack.c.bf16 %v519, %v518
    %v529 = vpack.c.bf16 %v521, %v520
    %v530 = vld [vmem:[%s6] sm:$0xff]
    %v531 = vld [vmem:[%s6 + $0x8] sm:$0xff]
    %v532 = vld [vmem:[%s6 + $0x10] sm:$0xff]
    %v533 = vld [vmem:[%s6 + $0x18] sm:$0xff]
    %535 = vset.pattern.permute.xlu0 0
    %536 = vperm.xlu0 %535, %v530
    %v537 = vpop.permute.xlu0 %536
    %540 = vset.pattern.permute.xlu0 0
    %541 = vperm.xlu0 %540, %v531
    %v542 = vpop.permute.xlu0 %541
    %545 = vset.pattern.permute.xlu0 0
    %546 = vperm.xlu0 %545, %v532
    %v547 = vpop.permute.xlu0 %546
    %550 = vset.pattern.permute.xlu0 0
    %551 = vperm.xlu0 %550, %v533
    %v552 = vpop.permute.xlu0 %551
    %v558 = vunpack.c.l.b16 %v522
    %v559 = vunpack.c.l.b16 %v523
    %v560 = vunpack.c.l.b16 %v524
    %v561 = vunpack.c.l.b16 %v525
    %v562 = vpack.c.b16 %v559, %v558
    %v563 = vpack.c.b16 %v561, %v560
    %vm564 = vcmask 523264
    %v566 = vsel %vm564, %v562, 0
    %v569 = vsel %vm564, %v563, 0
    %571 = vmatprep.subr.bf16.mxu0 0
    %572 = vmatpush1.bf16.msra.mxu0 %v526
    %573 = vmatprep.subr.bf16.mxu0 0
    %574 = vmatpush1.bf16.msra.mxu0 %v527
    %575 = vmatprep.subr.bf16.mxu0 0
    %576 = vmatpush1.bf16.msra.mxu0 %v528
    %577 = vmatprep.subr.bf16.mxu0 0
    %578 = vmatpush1.bf16.msra.mxu0 %v529
    %579 = vmatprep.subr.bf16.mxu0 0
    %580 = vmatpush1.bf16.msra.mxu0 0
    %581 = vmatprep.subr.bf16.mxu0 0
    %582 = vmatpush1.bf16.msra.mxu0 0
    %583 = vmatprep.subr.bf16.mxu0 0
    %584 = vmatpush1.bf16.msra.mxu0 0
    %585 = vmatprep.subr.bf16.mxu0 0
    %586 = vmatpush1.bf16.msra.mxu0 0
    %587 = vmatprep.subr.bf16.mxu0 0
    %588 = vmatpush1.bf16.msra.mxu0 0
    %589 = vmatprep.subr.bf16.mxu0 0
    %590 = vmatpush1.bf16.msra.mxu0 0
    %591 = vmatprep.subr.bf16.mxu0 0
    %592 = vmatpush1.bf16.msra.mxu0 0
    %593 = vmatprep.subr.bf16.mxu0 0
    %594 = vmatpush1.bf16.msra.mxu0 0
    %595 = vmatprep.subr.bf16.mxu0 0
    %596 = vmatpush1.bf16.msra.mxu0 0
    %597 = vmatprep.subr.bf16.mxu0 0
    %598 = vmatpush1.bf16.msra.mxu0 0
    %599 = vmatprep.subr.bf16.mxu0 0
    %600 = vmatpush1.bf16.msra.mxu0 0
    %601 = vmatprep.subr.bf16.mxu0 0
    %602 = vmatpush1.bf16.msra.mxu0 0
    %603 = vmatprep.mubr.bf16.mxu0 0
    %604 = vmatmul.mubr.bf16.gmra.mrb[0].mxu0 %v566
    %v605 = vpop.f32.mrb[0].mxu0
    %v606 = vadd.f32 %v537, %v605
    %v607 = vpop.f32.mrb[0].mxu0
    %v608 = vpop.f32.mrb[0].mxu0
    %v609 = vadd.f32 %v542, %v608
    %v610 = vpop.f32.mrb[0].mxu0
    %611 = vmatprep.mubr.bf16.mxu0 0
    %612 = vmatmul.mubr.bf16.gmra.mrb[0].mxu0 %v569
    %v613 = vpop.f32.mrb[0].mxu0
    %v614 = vadd.f32 %v547, %v613
    %v615 = vpop.f32.mrb[0].mxu0
    %v616 = vpop.f32.mrb[0].mxu0
    %v617 = vadd.f32 %v552, %v616
    %v618 = vpop.f32.mrb[0].mxu0
    %619 = vdwg.mxu0
    %v620 = vmax.f32 %v606, 0.0
    %v621 = vmax.f32 %v609, 0.0
    %v622 = vmax.f32 %v614, 0.0
    %v623 = vmax.f32 %v617, 0.0
    %v624 = vld [vmem:[%s7] sm:$0x3]
    %v625 = vld [vmem:[%s8] sm:$0x3]
    %627 = vset.pattern.permute.xlu0 0
    %628 = vperm.xlu0 %627, %v625
    %v629 = vpop.permute.xlu0 %628
    %vm631 = vcmask 261120
    %v633 = vsel %vm631, %v624, 0
    %635 = vmatprep.subr.mxu0 0.0
    %636 = vmatpush1.msra.mxu0 %v620
    %637 = vmatprep.subr.mxu0 0.0
    %638 = vmatpush1.msra.mxu0 %v621
    %639 = vmatprep.subr.mxu0 0.0
    %640 = vmatpush1.msra.mxu0 %v622
    %641 = vmatprep.subr.mxu0 0.0
    %642 = vmatpush1.msra.mxu0 %v623
    %643 = vmatprep.subr.mxu0 0.0
    %644 = vmatpush1.msra.mxu0 0.0
    %645 = vmatprep.subr.mxu0 0.0
    %646 = vmatpush1.msra.mxu0 0.0
    %647 = vmatprep.subr.mxu0 0.0
    %648 = vmatpush1.msra.mxu0 0.0
    %649 = vmatprep.subr.mxu0 0.0
    %650 = vmatpush1.msra.mxu0 0.0
    %651 = vmatprep.subr.mxu0 0.0
    %652 = vmatpush1.msra.mxu0 0.0
    %653 = vmatprep.subr.mxu0 0.0
    %654 = vmatpush1.msra.mxu0 0.0
    %655 = vmatprep.subr.mxu0 0.0
    %656 = vmatpush1.msra.mxu0 0.0
    %657 = vmatprep.subr.mxu0 0.0
    %658 = vmatpush1.msra.mxu0 0.0
    %659 = vmatprep.subr.mxu0 0.0
    %660 = vmatpush1.msra.mxu0 0.0
    %661 = vmatprep.subr.mxu0 0.0
    %662 = vmatpush1.msra.mxu0 0.0
    %663 = vmatprep.subr.mxu0 0.0
    %664 = vmatpush1.msra.mxu0 0.0
    %665 = vmatprep.subr.mxu0 0.0
    %666 = vmatpush1.msra.mxu0 0.0
    %667 = vmatprep.subr.mxu0 0.0
    %668 = vmatpush1.msra.mxu0 0.0
    %669 = vmatprep.subr.mxu0 0.0
    %670 = vmatpush1.msra.mxu0 0.0
    %671 = vmatprep.subr.mxu0 0.0
    %672 = vmatpush1.msra.mxu0 0.0
    %673 = vmatprep.subr.mxu0 0.0
    %674 = vmatpush1.msra.mxu0 0.0
    %675 = vmatprep.subr.mxu0 0.0
    %676 = vmatpush1.msra.mxu0 0.0
    %677 = vmatprep.subr.mxu0 0.0
    %678 = vmatpush1.msra.mxu0 0.0
    %679 = vmatprep.subr.mxu0 0.0
    %680 = vmatpush1.msra.mxu0 0.0
    %681 = vmatprep.subr.mxu0 0.0
    %682 = vmatpush1.msra.mxu0 0.0
    %683 = vmatprep.subr.mxu0 0.0
    %684 = vmatpush1.msra.mxu0 0.0
    %685 = vmatprep.subr.mxu0 0.0
    %686 = vmatpush1.msra.mxu0 0.0
    %687 = vmatprep.subr.mxu0 0.0
    %688 = vmatpush1.msra.mxu0 0.0
    %689 = vmatprep.subr.mxu0 0.0
    %690 = vmatpush1.msra.mxu0 0.0
    %691 = vmatprep.subr.mxu0 0.0
    %692 = vmatpush1.msra.mxu0 0.0
    %693 = vmatprep.subr.mxu0 0.0
    %694 = vmatpush1.msra.mxu0 0.0
    %695 = vmatprep.subr.mxu0 0.0
    %696 = vmatpush1.msra.mxu0 0.0
    %697 = vmatprep.subr.mxu0 0.0
    %698 = vmatpush1.msra.mxu0 0.0
    %699 = vmatprep.mubr.f32.mxu0 0.0
    %700 = vmatmul.mubr.f32.gmra.mrb[0].mxu0 %v633
    %v701 = vpop.f32.mrb[0].mxu0
    %v702 = vadd.f32 %v629, %v701
    %v703 = vpop.f32.mrb[0].mxu0
    %704 = vdwg.mxu0
    %705 = vst [vmem:[#allocation2] sm:$0x3] %v702
    // Predicated region
    $region38: #{tpu_custom_call.1} parent=1 // pred_check
      _
    $region39: #{tpu_custom_call.1} parent=1 // pred_check_branch
      %707 = sbr.rel (0) target = $region41
    $region40: #{tpu_custom_call.1} parent=1 // pred_region
      %s709 = ssub.s32 32, 32
      %710 = vsyncadd [#allocation3], %s709
      %s712 = sshll.u32 [#allocation2], 4
      %s713 = int_to_ptr.vmem [resolvable:$true] %s712
      %715 = dma.vmem_to_hbm [thread:$0]  %s713, 32, %s9, [#allocation3]
    $region41: #{tpu_custom_call.1} parent=1 // pred_fallthru
      _
    // Predicated region
    $region42: #{tpu_custom_call.1} parent=1 // pred_check
      _
    $region43: #{tpu_custom_call.1} parent=1 // pred_check_branch
      %717 = sbr.rel (0) target = $region45
    $region44: #{tpu_custom_call.1} parent=1 // pred_region
      %718 = dma.done [#allocation3], 32
    $region45: #{tpu_custom_call.1} parent=1 // pred_fallthru
      _
    %719 = vsyncpa [#allocation3], 1

</llo_original>
